<compile_context>
chip_gen: v7x
topology: tpu7x:2x2x1
jax: 0.10.0
libtpu: 0.0.40
codegen_flags: <defaults>
</compile_context>

<pallas_src>
import jax
import jax.numpy as jnp
from jax.experimental import pallas as pl
from jax.experimental.pallas import tpu as pltpu

N_NODES = 64        # nodes per (synthetic) graph
K_NN = 6            # KNNGraph(k=6)
IN_FEAT = 1         # GCNConv(1, 16)
HIDDEN = 16
NUM_CLASSES = 10    # ModelNet '10'
LANES = 128         # lane-dense padded class axis
BATCH = 4           # graphs per pallas_call
NEG_INF = -1e30     # finite "-inf" for padded class lanes

P_ROWS = 3 + HIDDEN  # packed params: [w1; b1; w2 (16 rows); b2] -> [19, 128]


def gcn_kernel(a_ref, x_ref, p_ref, out_ref):
    """One graph per grid step: full 2-layer GCN forward on VMEM-resident blocks."""
    a = a_ref[0]                              # [N, N]  bf16 (MXU operand)
    x = x_ref[0]                              # [N, 1]  f32

    w1 = p_ref[0:1, :HIDDEN]                  # [1, 16]   f32
    b1 = p_ref[1:2, :HIDDEN]                  # [1, 16]   f32
    w2 = p_ref[2:2 + HIDDEN, :]               # [16, 128] f32 (classes zero-padded)
    b2 = p_ref[2 + HIDDEN:3 + HIDDEN, :]      # [1, 128]  f32 (classes zero-padded)

    # ---- GCNConv layer 1: A @ (x W1) + b1 == (A x) W1 + b1 (exact, K == 1) ----
    ax = jnp.dot(a, x.astype(jnp.bfloat16),
                 preferred_element_type=jnp.float32)          # [N, 1] f32 accum
    h1 = jnp.maximum(ax * w1 + b1, 0.0)                        # [N, 16] f32, ReLU on VPU

    # F.dropout(x, training=self.training): identity in eval mode.
    # TODO(synk): training-mode dropout (stateful PRNG mask) not emitted here.

    # ---- GCNConv layer 2: A @ (H1 W2) + b2, class axis pre-padded to 128 lanes ----
    xw2 = jnp.dot(h1.astype(jnp.bfloat16), w2.astype(jnp.bfloat16),
                  preferred_element_type=jnp.float32)          # [N, 128]
    logits = jnp.dot(a, xw2.astype(jnp.bfloat16),
                     preferred_element_type=jnp.float32) + b2  # [N, 128]

    # ---- log_softmax over the class axis (dim=1), padded lanes masked out ----
    col = jax.lax.broadcasted_iota(jnp.int32, logits.shape, 1)
    logits = jnp.where(col < NUM_CLASSES, logits, NEG_INF)

    m = jnp.max(logits, axis=1, keepdims=True)
    z = logits - m
    lse = jnp.log(jnp.sum(jnp.exp(z), axis=1, keepdims=True))
    out_ref[0] = z - lse                                       # lane-dense [N, 128] store


def pack_params(w1, b1, w2, b2):
    """Pack all GCN parameters into one [19, 128] f32 VMEM buffer (single DMA)."""
    p = jnp.zeros((P_ROWS, LANES), jnp.float32)
    p = p.at[0, :HIDDEN].set(w1[0])
    p = p.at[1, :HIDDEN].set(b1[0])
    p = p.at[2:2 + HIDDEN, :NUM_CLASSES].set(w2)
    p = p.at[2 + HIDDEN, :NUM_CLASSES].set(b2[0])
    return p


def gcn_forward(a_hat, x, w1, b1, w2, b2):
    """a_hat: [B, N, N] f32, x: [B, N, 1] f32 -> log-probs [B, N, NUM_CLASSES]."""
    b_sz, n, _ = a_hat.shape
    a_bf16 = a_hat.astype(jnp.bfloat16)        # halve A_hat HBM traffic; f32 accum on MXU
    params = pack_params(w1, b1, w2, b2)

    flops = 2 * b_sz * (n * n * IN_FEAT + n * HIDDEN * LANES + n * n * LANES)
    transcendentals = b_sz * n * (LANES + 1)   # exp per lane + log per row
    bytes_accessed = (a_bf16.size * 2 + x.size * 4 + params.size * 4
                      + b_sz * n * LANES * 4)

    out_padded = pl.pallas_call(
        gcn_kernel,
        out_shape=jax.ShapeDtypeStruct((b_sz, n, LANES), jnp.float32),
        grid_spec=pltpu.PrefetchScalarGridSpec(
            num_scalar_prefetch=0,
            grid=(b_sz,),
            in_specs=[
                pl.BlockSpec((1, n, n), lambda b: (b, 0, 0)),         # per-graph A_hat
                pl.BlockSpec((1, n, IN_FEAT), lambda b: (b, 0, 0)),   # per-graph features
                pl.BlockSpec((P_ROWS, LANES), lambda b: (0, 0)),      # params, resident
            ],
            out_specs=pl.BlockSpec((1, n, LANES), lambda b: (b, 0, 0)),
        ),
        compiler_params=pltpu.CompilerParams(
            dimension_semantics=("parallel",)),
        cost_estimate=pl.CostEstimate(
            flops=flops,
            transcendentals=transcendentals,
            bytes_accessed=bytes_accessed),
    )(a_bf16, x, params)

    return out_padded[:, :, :NUM_CLASSES]


def knn_edge_index(pos, k):
    """Deterministic KNN graph (k nearest neighbors, excluding self).
    Returns edge_index [2, N*k] with row 0 = source, row 1 = target."""
    n = pos.shape[0]
    d2 = jnp.sum((pos[:, None, :] - pos[None, :, :]) ** 2, axis=-1)   # [N, N]
    order = jnp.argsort(d2, axis=1)                                   # self first
    nbrs = order[:, 1:k + 1]                                          # [N, k]
    tgt = jnp.repeat(jnp.arange(n), k)
    src = nbrs.reshape(-1)
    return jnp.stack([src, tgt], axis=0).astype(jnp.int32)


def normalized_adjacency(edge_index, n):
    """Dense A_hat = D^{-1/2} (A + I) D^{-1/2}, matching PyG gcn_norm."""
    src, tgt = edge_index[0], edge_index[1]
    a = jnp.zeros((n, n), jnp.float32).at[tgt, src].set(1.0)
    a = a + jnp.eye(n, dtype=jnp.float32)                 # add self-loops
    deg = jnp.sum(a, axis=1)
    d_inv_sqrt = jnp.where(deg > 0, 1.0 / jnp.sqrt(deg), 0.0)
    return d_inv_sqrt[:, None] * a * d_inv_sqrt[None, :]


def init_params(key):
    """Deterministic Glorot-uniform weights + zero biases (PyG GCNConv init)."""
    k1, k2 = jax.random.split(key)

    def glorot(k, fan_in, fan_out):
        limit = jnp.sqrt(6.0 / (fan_in + fan_out))
        return jax.random.uniform(k, (fan_in, fan_out), jnp.float32,
                                  minval=-limit, maxval=limit)

    w1 = glorot(k1, IN_FEAT, HIDDEN)
    b1 = jnp.zeros((1, HIDDEN), jnp.float32)
    w2 = glorot(k2, HIDDEN, NUM_CLASSES)
    b2 = jnp.zeros((1, NUM_CLASSES), jnp.float32)
    return w1, b1, w2, b2


def reference_forward(a_hat, x, w1, b1, w2, b2):
    """Plain-JAX reference matching the kernel's numerics (bf16 MXU operands, f32 accum)."""
    a = a_hat.astype(jnp.bfloat16)
    ax = jnp.einsum('bij,bjk->bik', a, x.astype(jnp.bfloat16),
                    preferred_element_type=jnp.float32)                  # [B, N, 1]
    h1 = jnp.maximum(ax * w1 + b1, 0.0)                                  # [B, N, 16]
    xw2 = jnp.einsum('bnh,hc->bnc', h1.astype(jnp.bfloat16),
                     w2.astype(jnp.bfloat16),
                     preferred_element_type=jnp.float32)                 # [B, N, 10]
    logits = jnp.einsum('bij,bjc->bic', a, xw2.astype(jnp.bfloat16),
                        preferred_element_type=jnp.float32) + b2         # [B, N, 10]
    return jax.nn.log_softmax(logits, axis=-1)


if __name__ == "__main__":
    key = jax.random.PRNGKey(0)
    k_pos, k_x, k_w = jax.random.split(key, 3)

    # Batch of synthetic point clouds -> KNN(k=6) graphs (stand-in for ModelNet pre_transform).
    a_list, x_list = [], []
    pos_keys = jax.random.split(k_pos, BATCH)
    x_keys = jax.random.split(k_x, BATCH)
    for b in range(BATCH):
        pos = jax.random.normal(pos_keys[b], (N_NODES, 3), jnp.float32)
        edge_index = knn_edge_index(pos, K_NN)
        a_list.append(normalized_adjacency(edge_index, N_NODES))
        x_list.append(jax.random.normal(x_keys[b], (N_NODES, IN_FEAT), jnp.float32))
    a_hat = jnp.stack(a_list, axis=0)          # [B, N, N]
    x = jnp.stack(x_list, axis=0)              # [B, N, 1]

    w1, b1, w2, b2 = init_params(jax.random.PRNGKey(42))

    out = gcn_forward(a_hat, x, w1, b1, w2, b2)
    out = jax.block_until_ready(out)

    ref = reference_forward(a_hat, x, w1, b1, w2, b2)
    assert out.shape == (BATCH, N_NODES, NUM_CLASSES)
    assert jnp.all(jnp.isfinite(out))
    assert jnp.allclose(out, ref, atol=1e-3, rtol=1e-3)

    print("KERNEL_OK")
</pallas_src>

<mosaic_0001>
module attributes {stable_mosaic.version = 11 : i64} {
  func.func @gcn_kernel(%arg0: i32, %arg1: memref<1x64x64xbf16, #tpu.memory_space<vmem>>, %arg2: memref<1x64x1xf32, #tpu.memory_space<vmem>>, %arg3: memref<19x128xf32, #tpu.memory_space<vmem>>, %arg4: memref<1x64x128xf32, #tpu.memory_space<vmem>>) attributes {dimension_semantics = [#tpu.dimension_semantics<parallel>], iteration_bounds = array<i64: 4>, scalar_prefetch = 0 : i64, scratch_operands = 0 : i64, tpu.core_type = #tpu.core_type<tc>, window_params = [{transform_indices = @transform_0, window_bounds = array<i64: 1, 64, 64>}, {transform_indices = @transform_1, window_bounds = array<i64: 1, 64, 1>}, {pipeline_mode = #tpu.pipeline_mode<synchronous>, transform_indices = @transform_2, window_bounds = array<i64: 19, 128>}, {transform_indices = @transform_3, window_bounds = array<i64: 1, 64, 128>}]} {
    %c0 = arith.constant 0 : index
    %c0_0 = arith.constant 0 : index
    %c0_1 = arith.constant 0 : index
    %0 = vector.load %arg1[%c0, %c0_0, %c0_1] : memref<1x64x64xbf16, #tpu.memory_space<vmem>>, vector<1x64x64xbf16>
    %1 = vector.shape_cast %0 : vector<1x64x64xbf16> to vector<64x64xbf16>
    %c0_2 = arith.constant 0 : index
    %c0_3 = arith.constant 0 : index
    %c0_4 = arith.constant 0 : index
    %2 = vector.load %arg2[%c0_2, %c0_3, %c0_4] : memref<1x64x1xf32, #tpu.memory_space<vmem>>, vector<1x64x1xf32>
    %3 = vector.shape_cast %2 : vector<1x64x1xf32> to vector<64x1xf32>
    %c0_5 = arith.constant 0 : index
    %c0_6 = arith.constant 0 : index
    %4 = vector.load %arg3[%c0_5, %c0_6] : memref<19x128xf32, #tpu.memory_space<vmem>>, vector<1x16xf32>
    %c1 = arith.constant 1 : index
    %c0_7 = arith.constant 0 : index
    %5 = vector.load %arg3[%c1, %c0_7] : memref<19x128xf32, #tpu.memory_space<vmem>>, vector<1x16xf32>
    %c2 = arith.constant 2 : index
    %c0_8 = arith.constant 0 : index
    %6 = vector.load %arg3[%c2, %c0_8] : memref<19x128xf32, #tpu.memory_space<vmem>>, vector<16x128xf32>
    %c18 = arith.constant 18 : index
    %c0_9 = arith.constant 0 : index
    %7 = vector.load %arg3[%c18, %c0_9] : memref<19x128xf32, #tpu.memory_space<vmem>>, vector<1x128xf32>
    %8 = arith.truncf %3 : vector<64x1xf32> to vector<64x1xbf16>
    %cst = arith.constant dense<0.000000e+00> : vector<64x1xf32>
    %9 = tpu.matmul %1, %8, %cst {dimension_numbers = #tpu.dot_dimension_numbers<[1], [0], [0], [1], [0, 0, 1, 1], [], []>} : vector<64x64xbf16>, vector<64x1xbf16>, vector<64x1xf32> -> vector<64x1xf32>
    %10 = vector.broadcast %9 : vector<64x1xf32> to vector<64x16xf32>
    %11 = vector.broadcast %4 : vector<1x16xf32> to vector<64x16xf32>
    %12 = arith.mulf %10, %11 : vector<64x16xf32>
    %13 = vector.broadcast %5 : vector<1x16xf32> to vector<64x16xf32>
    %14 = arith.addf %12, %13 : vector<64x16xf32>
    %cst_10 = arith.constant 0.000000e+00 : f32
    %15 = vector.broadcast %cst_10 : f32 to vector<64x16xf32>
    %16 = arith.maximumf %14, %15 : vector<64x16xf32>
    %17 = arith.truncf %16 : vector<64x16xf32> to vector<64x16xbf16>
    %18 = arith.truncf %6 : vector<16x128xf32> to vector<16x128xbf16>
    %cst_11 = arith.constant dense<0.000000e+00> : vector<64x128xf32>
    %19 = tpu.matmul %17, %18, %cst_11 {dimension_numbers = #tpu.dot_dimension_numbers<[1], [0], [0], [1], [0, 0, 1, 1], [], []>} : vector<64x16xbf16>, vector<16x128xbf16>, vector<64x128xf32> -> vector<64x128xf32>
    %20 = arith.truncf %19 : vector<64x128xf32> to vector<64x128xbf16>
    %cst_12 = arith.constant dense<0.000000e+00> : vector<64x128xf32>
    %21 = tpu.matmul %1, %20, %cst_12 {dimension_numbers = #tpu.dot_dimension_numbers<[1], [0], [0], [1], [0, 0, 1, 1], [], []>} : vector<64x64xbf16>, vector<64x128xbf16>, vector<64x128xf32> -> vector<64x128xf32>
    %22 = vector.broadcast %7 : vector<1x128xf32> to vector<64x128xf32>
    %23 = arith.addf %21, %22 : vector<64x128xf32>
    %24 = tpu.iota {dimensions = array<i32: 1>} : vector<64x128xi32>
    %c10_i32 = arith.constant 10 : i32
    %25 = vector.broadcast %c10_i32 : i32 to vector<64x128xi32>
    %26 = arith.cmpi slt, %24, %25 : vector<64x128xi32>
    %cst_13 = arith.constant -1.000000e+30 : f32
    %27 = vector.broadcast %cst_13 : f32 to vector<64x128xf32>
    %28 = arith.select %26, %23, %27 : vector<64x128xi1>, vector<64x128xf32>
    %cst_14 = arith.constant dense<0xFF800000> : vector<64xf32>
    %29 = vector.multi_reduction <maximumf>, %28, %cst_14 [1] : vector<64x128xf32> to vector<64xf32>
    %30 = vector.shape_cast %29 : vector<64xf32> to vector<64x1xf32>
    %31 = vector.broadcast %30 : vector<64x1xf32> to vector<64x128xf32>
    %32 = arith.subf %28, %31 : vector<64x128xf32>
    %33 = math.exp %32 : vector<64x128xf32>
    %cst_15 = arith.constant dense<0.000000e+00> : vector<64xf32>
    %34 = vector.multi_reduction <add>, %33, %cst_15 [1] : vector<64x128xf32> to vector<64xf32>
    %35 = vector.shape_cast %34 : vector<64xf32> to vector<64x1xf32>
    %36 = math.log %35 : vector<64x1xf32>
    %37 = vector.broadcast %36 : vector<64x1xf32> to vector<64x128xf32>
    %38 = arith.subf %32, %37 : vector<64x128xf32>
    %c0_16 = arith.constant 0 : index
    %c0_17 = arith.constant 0 : index
    %c0_18 = arith.constant 0 : index
    %39 = vector.load %arg4[%c0_16, %c0_17, %c0_18] : memref<1x64x128xf32, #tpu.memory_space<vmem>>, vector<1x64x128xf32>
    %40 = vector.shape_cast %39 : vector<1x64x128xf32> to vector<64x128xf32>
    %41 = vector.shape_cast %38 : vector<64x128xf32> to vector<1x64x128xf32>
    tpu.vector_store %arg4[%c0_16, %c0_17, %c0_18], %41 {strides = array<i32>} : memref<1x64x128xf32, #tpu.memory_space<vmem>>, vector<1x64x128xf32>,
    return
  }
  func.func @transform_0(%arg0: i32) -> (i32, i32, i32) {
    %c0_i32 = arith.constant 0 : i32
    %c0_i32_0 = arith.constant 0 : i32
    %c0_i32_1 = arith.constant 0 : i32
    return %arg0, %c0_i32, %c0_i32_0 : i32, i32, i32
  }
  func.func @transform_1(%arg0: i32) -> (i32, i32, i32) {
    %c0_i32 = arith.constant 0 : i32
    %c0_i32_0 = arith.constant 0 : i32
    %c0_i32_1 = arith.constant 0 : i32
    return %arg0, %c0_i32, %c0_i32_0 : i32, i32, i32
  }
  func.func @transform_2(%arg0: i32) -> (i32, i32) {
    %c0_i32 = arith.constant 0 : i32
    %c0_i32_0 = arith.constant 0 : i32
    %c0_i32_1 = arith.constant 0 : i32
    return %c0_i32, %c0_i32_0 : i32, i32
  }
  func.func @transform_3(%arg0: i32) -> (i32, i32, i32) {
    %c0_i32 = arith.constant 0 : i32
    %c0_i32_0 = arith.constant 0 : i32
    %c0_i32_1 = arith.constant 0 : i32
    return %arg0, %c0_i32, %c0_i32_0 : i32, i32, i32
  }
}

</mosaic_0001>

<llo_original>
// kernel: tpu_custom_call.1
$region0: #{tpu_custom_call.1}
  #allocation0 [shape = 'u32[]', space=smem, size = 0x4, offset = 0x4, fixed_abs, tag = 'smem constant byte address 0x4 - core index']
  #allocation1 [shape = 'u32[144,128]{1,0:T(1,128)}', space=vmem, size = 0x12000, scoped, tag = 'internal scratch']
  %s0 = inlined_call_operand.vmem [shape: bf16[4,64,64], index: 0, kind: input, shape index: {}]
  %s1 = inlined_call_operand.vmem [shape: f32[4,64,1], index: 1, kind: input, shape index: {}]
  %s2 = inlined_call_operand.vmem [shape: f32[19,128], index: 2, kind: input, shape index: {}]
  %s3 = inlined_call_operand.hbm [shape: f32[4,64,128], index: 3, kind: output, shape index: {}]
  %s4 = sld [smem:[#allocation0]]
  $region45: #{tpu_custom_call.1} parent=0
    _
  %s6 = ssub.s32 1, %s4
  %s7 = scalar_select 0, %s6, %s4
  $region1: #{tpu_custom_call.1} parent=0
    #allocation2 [shape = 'u8[65536]{0}', space=vmem, size = 0x10000, scoped, tag = 'output window, operand 0']
    #allocation3 [shape = 's32[2]{0}', space=sflag, size = 0x8, scoped, tag = 'scoped memory for tpu_custom_call.1']
    %8 = vsyncpa [#allocation3], 0
    %s9 = scalar_lea.sflag [#allocation3], 1
    %10 = vsyncpa %s9, 0
    loop: start=0, step=1, limit=6
    $region2: #{tpu_custom_call.1} parent=1 // loop_pre_header
      _
    $region3: #{tpu_custom_call.1} parent=1 // loop_header
      %s12 = sphi 0, %s16
      %p13 = scmp.ge.s32.totalorder %s12, 6
      %s22 = sphi 0, %s24
      %s25 = sphi 0, %s22
      %s26 = sphi 0, %s25
      %s42 = sphi 0, %s26
      %s48 = sphi 0, %s50
      %s51 = sphi 0, %s48
      %s52 = sphi 0, %s51
      %s68 = sphi 0, %s52
      %s72 = sphi 0, %s72
      %s74 = sphi 0, %s72
      %s75 = sphi 0, %s74
      %s89 = sphi 0, %s75
      %s95 = sphi 0, %s97
      %s98 = sphi 0, %s95
      %s99 = sphi 0, %s98
      %s115 = sphi 0, %s99
    $region4: #{tpu_custom_call.1} parent=1 // loop_header_branch
      %15 = sbr.rel (%p13) target = $region8
    $region5: #{tpu_custom_call.1} parent=1 // loop_body
      %s17 = ssub.s32 %s12, 1
      %s18 = ssub.s32 %s12, 2
      %s19 = sadd.s32 %s12, 1
      %s20 = ssub.s32 %s12, %s19
      %p21 = scmp.eq.s32.totalorder %s20, 0
      %s23 = sadd.s32 %s22, 1
      %s24 = scalar_select %p21, %s22, %s23
      %p27 = pneg %p21
      %p28 = scmp.eq.s32.totalorder %s12, 3
      %p29 = por %p27, %p28
      %p30 = scmp.ne.s32.totalorder %s22, %s25
      %p31 = scmp.eq.s32.totalorder %s12, 0
      %p32 = por %p30, %p31
      %p33 = scmp.ne.s32.totalorder %s22, %s25
      %p34 = scmp.eq.s32.totalorder %s17, 3
      %p35 = por %p33, %p34
      %p36 = scmp.ne.s32.totalorder %s25, %s26
      %p37 = scmp.eq.s32.totalorder %s17, 0
      %p38 = por %p36, %p37
      %p39 = scmp.ne.s32.totalorder %s25, %s26
      %p40 = scmp.eq.s32.totalorder %s18, 3
      %p41 = por %p39, %p40
      %p43 = scmp.ne.s32.totalorder %s26, %s42
      %p44 = scmp.eq.s32.totalorder %s18, 0
      %p45 = por %p43, %p44
      %s46 = ssub.s32 %s12, %s19
      %p47 = scmp.eq.s32.totalorder %s46, 0
      %s49 = sadd.s32 %s48, 1
      %s50 = scalar_select %p47, %s48, %s49
      %p53 = pneg %p47
      %p54 = scmp.eq.s32.totalorder %s12, 3
      %p55 = por %p53, %p54
      %p56 = scmp.ne.s32.totalorder %s48, %s51
      %p57 = scmp.eq.s32.totalorder %s12, 0
      %p58 = por %p56, %p57
      %p59 = scmp.ne.s32.totalorder %s48, %s51
      %p60 = scmp.eq.s32.totalorder %s17, 3
      %p61 = por %p59, %p60
      %p62 = scmp.ne.s32.totalorder %s51, %s52
      %p63 = scmp.eq.s32.totalorder %s17, 0
      %p64 = por %p62, %p63
      %p65 = scmp.ne.s32.totalorder %s51, %s52
      %p66 = scmp.eq.s32.totalorder %s18, 3
      %p67 = por %p65, %p66
      %p69 = scmp.ne.s32.totalorder %s52, %s68
      %p70 = scmp.eq.s32.totalorder %s18, 0
      %p71 = por %p69, %p70
      %s73 = sadd.s32 %s72, 1
      %p76 = scmp.eq.s32.totalorder %s12, 3
      %p77 = scmp.ne.s32.totalorder %s72, %s74
      %p78 = scmp.eq.s32.totalorder %s12, 0
      %p79 = por %p77, %p78
      %p80 = scmp.ne.s32.totalorder %s72, %s74
      %p81 = scmp.eq.s32.totalorder %s17, 3
      %p82 = por %p80, %p81
      %p83 = scmp.ne.s32.totalorder %s74, %s75
      %p84 = scmp.eq.s32.totalorder %s17, 0
      %p85 = por %p83, %p84
      %p86 = scmp.ne.s32.totalorder %s74, %s75
      %p87 = scmp.eq.s32.totalorder %s18, 3
      %p88 = por %p86, %p87
      %p90 = scmp.ne.s32.totalorder %s75, %s89
      %p91 = scmp.eq.s32.totalorder %s18, 0
      %p92 = por %p90, %p91
      %s93 = ssub.s32 %s12, %s19
      %p94 = scmp.eq.s32.totalorder %s93, 0
      %s96 = sadd.s32 %s95, 1
      %s97 = scalar_select %p94, %s95, %s96
      %p100 = pneg %p94
      %p101 = scmp.eq.s32.totalorder %s12, 3
      %p102 = por %p100, %p101
      %p103 = scmp.ne.s32.totalorder %s95, %s98
      %p104 = scmp.eq.s32.totalorder %s12, 0
      %p105 = por %p103, %p104
      %p106 = scmp.ne.s32.totalorder %s95, %s98
      %p107 = scmp.eq.s32.totalorder %s17, 3
      %p108 = por %p106, %p107
      %p109 = scmp.ne.s32.totalorder %s98, %s99
      %p110 = scmp.eq.s32.totalorder %s17, 0
      %p111 = por %p109, %p110
      %p112 = scmp.ne.s32.totalorder %s98, %s99
      %p113 = scmp.eq.s32.totalorder %s18, 3
      %p114 = por %p112, %p113
      %p116 = scmp.ne.s32.totalorder %s99, %s115
      %p117 = scmp.eq.s32.totalorder %s18, 0
      %p118 = por %p116, %p117
      %p119 = scmp.le.s32.totalorder 1, %s12
      %p120 = scmp.lt.s32.totalorder %s12, 5
      %p121 = pnand %p119, %p120
      %p122 = pneg %p121
      // Predicated region
      $region9: #{tpu_custom_call.1} parent=5 // pred_check
        _
      $region10: #{tpu_custom_call.1} parent=5 // pred_check_branch
        %124 = sbr.rel (%p121) target = $region12
      $region11: #{tpu_custom_call.1} parent=5 // pred_region
        %s125 = ssub.s32 %s12, 1
        // Predicated region
        $region13: #{tpu_custom_call.1} parent=11 // pred_check
          %p126 = pneg %p85
        $region14: #{tpu_custom_call.1} parent=11 // pred_check_branch
          %128 = sbr.rel (%p126) target = $region16
        $region15: #{tpu_custom_call.1} parent=11 // pred_region
          _
        $region16: #{tpu_custom_call.1} parent=11 // pred_fallthru
          _
      $region12: #{tpu_custom_call.1} parent=5 // pred_fallthru
        _
      %p129 = scmp.lt.s32.totalorder %s12, 4
      // Predicated region
      $region17: #{tpu_custom_call.1} parent=5 // pred_check
        %p130 = pneg %p129
      $region18: #{tpu_custom_call.1} parent=5 // pred_check_branch
        %132 = sbr.rel (%p130) target = $region20
      $region19: #{tpu_custom_call.1} parent=5 // pred_region
        // Predicated region
        $region21: #{tpu_custom_call.1} parent=19 // pred_check
          %p133 = pneg %p32
        $region22: #{tpu_custom_call.1} parent=19 // pred_check_branch
          %135 = sbr.rel (%p133) target = $region24
        $region23: #{tpu_custom_call.1} parent=19 // pred_region
          %p136 = scmp.lt.s32.totalorder %s12, 3
          %s137 = scalar_select %p136, %s12, 3
          %s138 = smul.addr %s137, 8
          %s139 = smul.addr %s138, 4
          %s140 = scalar_lea.vmem %s0, %s139
        $region24: #{tpu_custom_call.1} parent=19 // pred_fallthru
          _
        // Predicated region
        $region25: #{tpu_custom_call.1} parent=19 // pred_check
          %p141 = pneg %p58
        $region26: #{tpu_custom_call.1} parent=19 // pred_check_branch
          %143 = sbr.rel (%p141) target = $region28
        $region27: #{tpu_custom_call.1} parent=19 // pred_region
          %p144 = scmp.lt.s32.totalorder %s12, 3
          %s145 = scalar_select %p144, %s12, 3
          %s146 = smul.addr %s145, 8
          %s147 = smul.addr %s146, 8
          %s148 = scalar_lea.vmem %s1, %s147
        $region28: #{tpu_custom_call.1} parent=19 // pred_fallthru
          _
      $region20: #{tpu_custom_call.1} parent=5 // pred_fallthru
        _
      %p149 = scmp.le.s32.totalorder 1, %s12
      %p150 = scmp.lt.s32.totalorder %s12, 5
      %p151 = pnand %p149, %p150
      %p152 = pneg %p151
      // Predicated region
      $region29: #{tpu_custom_call.1} parent=5 // pred_check
        _
      $region30: #{tpu_custom_call.1} parent=5 // pred_check_branch
        %154 = sbr.rel (%p151) target = $region32
      $region31: #{tpu_custom_call.1} parent=5 // pred_region
        %s155 = ssub.s32 %s12, 1
        %p156 = scmp.lt.s32.totalorder %s17, 3
        %s157 = scalar_select %p156, %s17, 3
        %s158 = smul.addr %s157, 8
        %s159 = smul.addr %s158, 4
        %s160 = scalar_lea.vmem %s0, %s159
        %p161 = pneg %p38
        %p162 = pneg %p35
        %p163 = scmp.lt.s32.totalorder %s17, 3
        %s164 = scalar_select %p163, %s17, 3
        %s165 = smul.addr %s164, 8
        %s166 = smul.addr %s165, 8
        %s167 = scalar_lea.vmem %s1, %s166
        %p168 = pneg %p64
        %p169 = pneg %p61
        %p170 = pneg %p85
        %p171 = pneg %p82
        %p172 = pneg %p111
        %p173 = pneg %p108
        %s174 = sand.u32 %s98, 1
        %s175 = scalar_lea.sflag [#allocation3], %s174
        %s176 = sand.u32 %s98, 1
        %s177 = smul.addr %s176, 64
        %s178 = scalar_lea.vmem [#allocation2], %s177
        %p179 = scmp.lt.s32.totalorder %s17, 3
        %s180 = scalar_select %p179, %s17, 3
        %s181 = smul.addr %s180, 8
        %s182 = smul.addr %s181, 4
        %s183 = scalar_lea.vmem %s0, %s182
        %p184 = scmp.lt.s32.totalorder %s17, 3
        %s185 = scalar_select %p184, %s17, 3
        %s186 = smul.addr %s185, 8
        %s187 = smul.addr %s186, 8
        %s188 = scalar_lea.vmem %s1, %s187
        %v190 = vld [vmem:[%s183] sm:$0xf]
        %v191 = vld [vmem:[%s183 + $0x4] sm:$0xf]
        %v192 = vld [vmem:[%s183 + $0x8] sm:$0xf]
        %v193 = vld [vmem:[%s183 + $0xc] sm:$0xf]
        %v194 = vld [vmem:[%s183 + $0x10] sm:$0xf]
        %v195 = vld [vmem:[%s183 + $0x14] sm:$0xf]
        %v196 = vld [vmem:[%s183 + $0x18] sm:$0xf]
        %v197 = vld [vmem:[%s183 + $0x1c] sm:$0xf]
        %v198 = vld [vmem:[%s188] sm:$0xff]
        %v199 = vld [vmem:[%s188 + $0x8] sm:$0xff]
        %v200 = vld [vmem:[%s188 + $0x10] sm:$0xff]
        %v201 = vld [vmem:[%s188 + $0x18] sm:$0xff]
        %v202 = vld [vmem:[%s188 + $0x20] sm:$0xff]
        %v203 = vld [vmem:[%s188 + $0x28] sm:$0xff]
        %v204 = vld [vmem:[%s188 + $0x30] sm:$0xff]
        %v205 = vld [vmem:[%s188 + $0x38] sm:$0xff]
        %v206 = vld [vmem:[%s2] sm:$0x1]
        %v207 = vld [vmem:[%s2 + $0x1] sm:$0x1]
        %v208 = vld [vmem:[%s2 + $0x2] sm:$0xff]
        %v209 = vld [vmem:[%s2 + $0xa] sm:$0xff]
        %v210 = vld [vmem:[%s2 + $0x12] sm:$0x1]
        %v211 = vpack.c.bf16 %v199, %v198
        %v212 = vpack.c.bf16 %v201, %v200
        %v213 = vpack.c.bf16 %v203, %v202
        %v214 = vpack.c.bf16 %v205, %v204
        %v223 = vunpack.c.l.b16 %v190
        %v224 = vunpack.c.l.b16 %v191
        %v225 = vunpack.c.l.b16 %v192
        %v226 = vunpack.c.l.b16 %v193
        %v227 = vunpack.c.l.b16 %v194
        %v228 = vunpack.c.l.b16 %v195
        %v229 = vunpack.c.l.b16 %v196
        %v230 = vunpack.c.l.b16 %v197
        %v231 = vpack.c.b16 %v224, %v223
        %v232 = vpack.c.b16 %v226, %v225
        %v233 = vpack.c.b16 %v228, %v227
        %v234 = vpack.c.b16 %v230, %v229
        %vm235 = vcmask 523264
        %v237 = vsel %vm235, %v231, 0
        %v240 = vsel %vm235, %v232, 0
        %v243 = vsel %vm235, %v233, 0
        %v246 = vsel %vm235, %v234, 0
        %248 = vmatprep.subr.bf16.mxu0 0
        %249 = vmatpush1.bf16.msra.mxu0 %v211
        %250 = vmatprep.subr.bf16.mxu0 0
        %251 = vmatpush1.bf16.msra.mxu0 %v212
        %252 = vmatprep.subr.bf16.mxu0 0
        %253 = vmatpush1.bf16.msra.mxu0 %v213
        %254 = vmatprep.subr.bf16.mxu0 0
        %255 = vmatpush1.bf16.msra.mxu0 %v214
        %256 = vmatprep.subr.bf16.mxu0 0
        %257 = vmatpush1.bf16.msra.mxu0 0
        %258 = vmatprep.subr.bf16.mxu0 0
        %259 = vmatpush1.bf16.msra.mxu0 0
        %260 = vmatprep.subr.bf16.mxu0 0
        %261 = vmatpush1.bf16.msra.mxu0 0
        %262 = vmatprep.subr.bf16.mxu0 0
        %263 = vmatpush1.bf16.msra.mxu0 0
        %264 = vmatprep.subr.bf16.mxu0 0
        %265 = vmatpush1.bf16.msra.mxu0 0
        %266 = vmatprep.subr.bf16.mxu0 0
        %267 = vmatpush1.bf16.msra.mxu0 0
        %268 = vmatprep.subr.bf16.mxu0 0
        %269 = vmatpush1.bf16.msra.mxu0 0
        %270 = vmatprep.subr.bf16.mxu0 0
        %271 = vmatpush1.bf16.msra.mxu0 0
        %272 = vmatprep.subr.bf16.mxu0 0
        %273 = vmatpush1.bf16.msra.mxu0 0
        %274 = vmatprep.subr.bf16.mxu0 0
        %275 = vmatpush1.bf16.msra.mxu0 0
        %276 = vmatprep.subr.bf16.mxu0 0
        %277 = vmatpush1.bf16.msra.mxu0 0
        %278 = vmatprep.subr.bf16.mxu0 0
        %279 = vmatpush1.bf16.msra.mxu0 0
        %280 = vmatprep.mubr.bf16.mxu0 0
        %281 = vmatmul.mubr.bf16.gmra.mrb[0].mxu0 %v237
        %v282 = vpop.f32.mrb[0].mxu0
        %v283 = vadd.f32 0.0, %v282
        %v284 = vpop.f32.mrb[0].mxu0
        %v285 = vpop.f32.mrb[0].mxu0
        %v286 = vadd.f32 0.0, %v285
        %v287 = vpop.f32.mrb[0].mxu0
        %288 = vmatprep.mubr.bf16.mxu0 0
        %289 = vmatmul.mubr.bf16.gmra.mrb[0].mxu0 %v240
        %v290 = vpop.f32.mrb[0].mxu0
        %v291 = vadd.f32 0.0, %v290
        %v292 = vpop.f32.mrb[0].mxu0
        %v293 = vpop.f32.mrb[0].mxu0
        %v294 = vadd.f32 0.0, %v293
        %v295 = vpop.f32.mrb[0].mxu0
        %296 = vmatprep.mubr.bf16.mxu0 0
        %297 = vmatmul.mubr.bf16.gmra.mrb[0].mxu0 %v243
        %v298 = vpop.f32.mrb[0].mxu0
        %v299 = vadd.f32 0.0, %v298
        %v300 = vpop.f32.mrb[0].mxu0
        %v301 = vpop.f32.mrb[0].mxu0
        %v302 = vadd.f32 0.0, %v301
        %v303 = vpop.f32.mrb[0].mxu0
        %304 = vmatprep.mubr.bf16.mxu0 0
        %305 = vmatmul.mubr.bf16.gmra.mrb[0].mxu0 %v246
        %v306 = vpop.f32.mrb[0].mxu0
        %v307 = vadd.f32 0.0, %v306
        %v308 = vpop.f32.mrb[0].mxu0
        %v309 = vpop.f32.mrb[0].mxu0
        %v310 = vadd.f32 0.0, %v309
        %v311 = vpop.f32.mrb[0].mxu0
        %312 = vdwg.mxu0
        %314 = vset.pattern.permute.xlu0 0
        %315 = vperm.xlu0 %314, %v283
        %v316 = vpop.permute.xlu0 %315
        %319 = vset.pattern.permute.xlu0 0
        %320 = vperm.xlu0 %319, %v286
        %v321 = vpop.permute.xlu0 %320
        %324 = vset.pattern.permute.xlu0 0
        %325 = vperm.xlu0 %324, %v291
        %v326 = vpop.permute.xlu0 %325
        %329 = vset.pattern.permute.xlu0 0
        %330 = vperm.xlu0 %329, %v294
        %v331 = vpop.permute.xlu0 %330
        %334 = vset.pattern.permute.xlu0 0
        %335 = vperm.xlu0 %334, %v299
        %v336 = vpop.permute.xlu0 %335
        %339 = vset.pattern.permute.xlu0 0
        %340 = vperm.xlu0 %339, %v302
        %v341 = vpop.permute.xlu0 %340
        %344 = vset.pattern.permute.xlu0 0
        %345 = vperm.xlu0 %344, %v307
        %v346 = vpop.permute.xlu0 %345
        %349 = vset.pattern.permute.xlu0 0
        %350 = vperm.xlu0 %349, %v310
        %v351 = vpop.permute.xlu0 %350
        %v353 = vlaneseq
        %v354 = vshrl.u32 %v353, 7
        %v355 = vsub.s32 0, %v354
        %v356 = vrot.slane %v206, %v355
        %v357 = vmul.f32 %v316, %v356
        %v358 = vmul.f32 %v321, %v356
        %v359 = vmul.f32 %v326, %v356
        %v360 = vmul.f32 %v331, %v356
        %v361 = vmul.f32 %v336, %v356
        %v362 = vmul.f32 %v341, %v356
        %v363 = vmul.f32 %v346, %v356
        %v364 = vmul.f32 %v351, %v356
        %v365 = vlaneseq
        %v366 = vshrl.u32 %v365, 7
        %v367 = vsub.s32 0, %v366
        %v368 = vrot.slane %v207, %v367
        %v369 = vadd.f32 %v357, %v368
        %v370 = vadd.f32 %v358, %v368
        %v371 = vadd.f32 %v359, %v368
        %v372 = vadd.f32 %v360, %v368
        %v373 = vadd.f32 %v361, %v368
        %v374 = vadd.f32 %v362, %v368
        %v375 = vadd.f32 %v363, %v368
        %v376 = vadd.f32 %v364, %v368
        %v377 = vmax.f32 %v369, 0.0
        %v378 = vmax.f32 %v370, 0.0
        %v379 = vmax.f32 %v371, 0.0
        %v380 = vmax.f32 %v372, 0.0
        %v381 = vmax.f32 %v373, 0.0
        %v382 = vmax.f32 %v374, 0.0
        %v383 = vmax.f32 %v375, 0.0
        %v384 = vmax.f32 %v376, 0.0
        %v385 = vpack.c.bf16 %v378, %v377
        %v386 = vpack.c.bf16 %v380, %v379
        %v387 = vpack.c.bf16 %v382, %v381
        %v388 = vpack.c.bf16 %v384, %v383
        %v389 = vpack.c.bf16 %v209, %v208
        %vm390 = vcmask 130048
        %v392 = vsel %vm390, %v385, 0
        %v395 = vsel %vm390, %v386, 0
        %v398 = vsel %vm390, %v387, 0
        %v401 = vsel %vm390, %v388, 0
        %403 = vmatprep.subr.bf16.mxu0 0
        %404 = vmatpush1.bf16.msra.mxu0 %v389
        %405 = vmatprep.subr.bf16.mxu0 0
        %406 = vmatpush1.bf16.msra.mxu0 0
        %407 = vmatprep.subr.bf16.mxu0 0
        %408 = vmatpush1.bf16.msra.mxu0 0
        %409 = vmatprep.subr.bf16.mxu0 0
        %410 = vmatpush1.bf16.msra.mxu0 0
        %411 = vmatprep.subr.bf16.mxu0 0
        %412 = vmatpush1.bf16.msra.mxu0 0
        %413 = vmatprep.subr.bf16.mxu0 0
        %414 = vmatpush1.bf16.msra.mxu0 0
        %415 = vmatprep.subr.bf16.mxu0 0
        %416 = vmatpush1.bf16.msra.mxu0 0
        %417 = vmatprep.subr.bf16.mxu0 0
        %418 = vmatpush1.bf16.msra.mxu0 0
        %419 = vmatprep.subr.bf16.mxu0 0
        %420 = vmatpush1.bf16.msra.mxu0 0
        %421 = vmatprep.subr.bf16.mxu0 0
        %422 = vmatpush1.bf16.msra.mxu0 0
        %423 = vmatprep.subr.bf16.mxu0 0
        %424 = vmatpush1.bf16.msra.mxu0 0
        %425 = vmatprep.subr.bf16.mxu0 0
        %426 = vmatpush1.bf16.msra.mxu0 0
        %427 = vmatprep.subr.bf16.mxu0 0
        %428 = vmatpush1.bf16.msra.mxu0 0
        %429 = vmatprep.subr.bf16.mxu0 0
        %430 = vmatpush1.bf16.msra.mxu0 0
        %431 = vmatprep.subr.bf16.mxu0 0
        %432 = vmatpush1.bf16.msra.mxu0 0
        %433 = vmatprep.subr.bf16.mxu0 0
        %434 = vmatpush1.bf16.msra.mxu0 0
        %435 = vmatprep.mubr.bf16.mxu0 0
        %436 = vmatmul.mubr.bf16.gmra.mrb[0].mxu0 %v392
        %v437 = vpop.f32.mrb[0].mxu0
        %v438 = vadd.f32 0.0, %v437
        %v439 = vpop.f32.mrb[0].mxu0
        %v440 = vpop.f32.mrb[0].mxu0
        %v441 = vadd.f32 0.0, %v440
        %v442 = vpop.f32.mrb[0].mxu0
        %443 = vmatprep.mubr.bf16.mxu0 0
        %444 = vmatmul.mubr.bf16.gmra.mrb[0].mxu0 %v395
        %v445 = vpop.f32.mrb[0].mxu0
        %v446 = vadd.f32 0.0, %v445
        %v447 = vpop.f32.mrb[0].mxu0
        %v448 = vpop.f32.mrb[0].mxu0
        %v449 = vadd.f32 0.0, %v448
        %v450 = vpop.f32.mrb[0].mxu0
        %451 = vmatprep.mubr.bf16.mxu0 0
        %452 = vmatmul.mubr.bf16.gmra.mrb[0].mxu0 %v398
        %v453 = vpop.f32.mrb[0].mxu0
        %v454 = vadd.f32 0.0, %v453
        %v455 = vpop.f32.mrb[0].mxu0
        %v456 = vpop.f32.mrb[0].mxu0
        %v457 = vadd.f32 0.0, %v456
        %v458 = vpop.f32.mrb[0].mxu0
        %459 = vmatprep.mubr.bf16.mxu0 0
        %460 = vmatmul.mubr.bf16.gmra.mrb[0].mxu0 %v401
        %v461 = vpop.f32.mrb[0].mxu0
        %v462 = vadd.f32 0.0, %v461
        %v463 = vpop.f32.mrb[0].mxu0
        %v464 = vpop.f32.mrb[0].mxu0
        %v465 = vadd.f32 0.0, %v464
        %v466 = vpop.f32.mrb[0].mxu0
        %467 = vdwg.mxu0
        %v468 = vpack.c.bf16 %v441, %v438
        %v469 = vpack.c.bf16 %v449, %v446
        %v470 = vpack.c.bf16 %v457, %v454
        %v471 = vpack.c.bf16 %v465, %v462
        %v472 = vlaneseq
        %v473 = vshrl.u32 %v472, 7
        %v474 = vsub.s32 0, %v473
        %v475 = vrot.slane %v210, %v474
        %476 = vmatprep.subr.bf16.mxu0 0
        %477 = vmatpush1.bf16.msra.mxu0 %v468
        %478 = vmatprep.subr.bf16.mxu0 0
        %479 = vmatpush1.bf16.msra.mxu0 %v469
        %480 = vmatprep.subr.bf16.mxu0 0
        %481 = vmatpush1.bf16.msra.mxu0 %v470
        %482 = vmatprep.subr.bf16.mxu0 0
        %483 = vmatpush1.bf16.msra.mxu0 %v471
        %484 = vmatprep.subr.bf16.mxu0 0
        %485 = vmatpush1.bf16.msra.mxu0 0
        %486 = vmatprep.subr.bf16.mxu0 0
        %487 = vmatpush1.bf16.msra.mxu0 0
        %488 = vmatprep.subr.bf16.mxu0 0
        %489 = vmatpush1.bf16.msra.mxu0 0
        %490 = vmatprep.subr.bf16.mxu0 0
        %491 = vmatpush1.bf16.msra.mxu0 0
        %492 = vmatprep.subr.bf16.mxu0 0
        %493 = vmatpush1.bf16.msra.mxu0 0
        %494 = vmatprep.subr.bf16.mxu0 0
        %495 = vmatpush1.bf16.msra.mxu0 0
        %496 = vmatprep.subr.bf16.mxu0 0
        %497 = vmatpush1.bf16.msra.mxu0 0
        %498 = vmatprep.subr.bf16.mxu0 0
        %499 = vmatpush1.bf16.msra.mxu0 0
        %500 = vmatprep.subr.bf16.mxu0 0
        %501 = vmatpush1.bf16.msra.mxu0 0
        %502 = vmatprep.subr.bf16.mxu0 0
        %503 = vmatpush1.bf16.msra.mxu0 0
        %504 = vmatprep.subr.bf16.mxu0 0
        %505 = vmatpush1.bf16.msra.mxu0 0
        %506 = vmatprep.subr.bf16.mxu0 0
        %507 = vmatpush1.bf16.msra.mxu0 0
        %508 = vmatprep.mubr.bf16.mxu0 0
        %509 = vmatmul.mubr.bf16.gmra.mrb[0].mxu0 %v237
        %v510 = vpop.f32.mrb[0].mxu0
        %v511 = vadd.f32 %v475, %v510
        %v512 = vpop.f32.mrb[0].mxu0
        %v513 = vpop.f32.mrb[0].mxu0
        %v514 = vadd.f32 %v475, %v513
        %v515 = vpop.f32.mrb[0].mxu0
        %516 = vmatprep.mubr.bf16.mxu0 0
        %517 = vmatmul.mubr.bf16.gmra.mrb[0].mxu0 %v240
        %v518 = vpop.f32.mrb[0].mxu0
        %v519 = vadd.f32 %v475, %v518
        %v520 = vpop.f32.mrb[0].mxu0
        %v521 = vpop.f32.mrb[0].mxu0
        %v522 = vadd.f32 %v475, %v521
        %v523 = vpop.f32.mrb[0].mxu0
        %524 = vmatprep.mubr.bf16.mxu0 0
        %525 = vmatmul.mubr.bf16.gmra.mrb[0].mxu0 %v243
        %v526 = vpop.f32.mrb[0].mxu0
        %v527 = vadd.f32 %v475, %v526
        %v528 = vpop.f32.mrb[0].mxu0
        %v529 = vpop.f32.mrb[0].mxu0
        %v530 = vadd.f32 %v475, %v529
        %v531 = vpop.f32.mrb[0].mxu0
        %532 = vmatprep.mubr.bf16.mxu0 0
        %533 = vmatmul.mubr.bf16.gmra.mrb[0].mxu0 %v246
        %v534 = vpop.f32.mrb[0].mxu0
        %v535 = vadd.f32 %v475, %v534
        %v536 = vpop.f32.mrb[0].mxu0
        %v537 = vpop.f32.mrb[0].mxu0
        %v538 = vadd.f32 %v475, %v537
        %v539 = vpop.f32.mrb[0].mxu0
        %540 = vdwg.mxu0
        %v541 = vlaneseq
        %v542 = vand.u32 %v541, 127
        %vm543 = vcmp.lt.s32.totalorder %v542, 10
        %v544 = vsel %vm543, %v511, -1e+30
        %v545 = vsel %vm543, %v514, -1e+30
        %v546 = vsel %vm543, %v519, -1e+30
        %v547 = vsel %vm543, %v522, -1e+30
        %v548 = vsel %vm543, %v527, -1e+30
        %v549 = vsel %vm543, %v530, -1e+30
        %v550 = vsel %vm543, %v535, -1e+30
        %v551 = vsel %vm543, %v538, -1e+30
        %552 = vmax.xlane.f32.xlu0 %v544
        %v553 = vpop.xlane.xlu0 %552
        %554 = vmax.xlane.f32.xlu0 %v545
        %v555 = vpop.xlane.xlu0 %554
        %556 = vmax.xlane.f32.xlu0 %v546
        %v557 = vpop.xlane.xlu0 %556
        %558 = vmax.xlane.f32.xlu0 %v547
        %v559 = vpop.xlane.xlu0 %558
        %560 = vmax.xlane.f32.xlu0 %v548
        %v561 = vpop.xlane.xlu0 %560
        %562 = vmax.xlane.f32.xlu0 %v549
        %v563 = vpop.xlane.xlu0 %562
        %564 = vmax.xlane.f32.xlu0 %v550
        %v565 = vpop.xlane.xlu0 %564
        %566 = vmax.xlane.f32.xlu0 %v551
        %v567 = vpop.xlane.xlu0 %566
        %v568 = vsub.f32 %v544, %v553
        %v569 = vsub.f32 %v545, %v555
        %v570 = vsub.f32 %v546, %v557
        %v571 = vsub.f32 %v547, %v559
        %v572 = vsub.f32 %v548, %v561
        %v573 = vsub.f32 %v549, %v563
        %v574 = vsub.f32 %v550, %v565
        %v575 = vsub.f32 %v551, %v567
        %v576 = vmul.f32 %v568, 1.442695
        %v577 = vpow.pop %v576
        %v578 = vmul.f32 %v569, 1.442695
        %v579 = vpow.pop %v578
        %v580 = vmul.f32 %v570, 1.442695
        %v581 = vpow.pop %v580
        %v582 = vmul.f32 %v571, 1.442695
        %v583 = vpow.pop %v582
        %v584 = vmul.f32 %v572, 1.442695
        %v585 = vpow.pop %v584
        %v586 = vmul.f32 %v573, 1.442695
        %v587 = vpow.pop %v586
        %v588 = vmul.f32 %v574, 1.442695
        %v589 = vpow.pop %v588
        %v590 = vmul.f32 %v575, 1.442695
        %v591 = vpow.pop %v590
        %592 = vadd.xlane.f32.xlu0 %v577
        %v593 = vpop.xlane.xlu0 %592
        %594 = vadd.xlane.f32.xlu0 %v579
        %v595 = vpop.xlane.xlu0 %594
        %596 = vadd.xlane.f32.xlu0 %v581
        %v597 = vpop.xlane.xlu0 %596
        %598 = vadd.xlane.f32.xlu0 %v583
        %v599 = vpop.xlane.xlu0 %598
        %600 = vadd.xlane.f32.xlu0 %v585
        %v601 = vpop.xlane.xlu0 %600
        %602 = vadd.xlane.f32.xlu0 %v587
        %v603 = vpop.xlane.xlu0 %602
        %604 = vadd.xlane.f32.xlu0 %v589
        %v605 = vpop.xlane.xlu0 %604
        %606 = vadd.xlane.f32.xlu0 %v591
        %v607 = vpop.xlane.xlu0 %606
        %v608 = vlog2.pop %v593
        %v609 = vmul.f32 %v608, 0.6931472
        %v610 = vlog2.pop %v595
        %v611 = vmul.f32 %v610, 0.6931472
        %v612 = vlog2.pop %v597
        %v613 = vmul.f32 %v612, 0.6931472
        %v614 = vlog2.pop %v599
        %v615 = vmul.f32 %v614, 0.6931472
        %v616 = vlog2.pop %v601
        %v617 = vmul.f32 %v616, 0.6931472
        %v618 = vlog2.pop %v603
        %v619 = vmul.f32 %v618, 0.6931472
        %v620 = vlog2.pop %v605
        %v621 = vmul.f32 %v620, 0.6931472
        %v622 = vlog2.pop %v607
        %v623 = vmul.f32 %v622, 0.6931472
        %v624 = vsub.f32 %v568, %v609
        %v625 = vsub.f32 %v569, %v611
        %v626 = vsub.f32 %v570, %v613
        %v627 = vsub.f32 %v571, %v615
        %v628 = vsub.f32 %v572, %v617
        %v629 = vsub.f32 %v573, %v619
        %v630 = vsub.f32 %v574, %v621
        %v631 = vsub.f32 %v575, %v623
        %632 = vst [vmem:[%s178] sm:$0xff] %v624
        %633 = vst [vmem:[%s178 + $0x8] sm:$0xff] %v625
        %634 = vst [vmem:[%s178 + $0x10] sm:$0xff] %v626
        %635 = vst [vmem:[%s178 + $0x18] sm:$0xff] %v627
        %636 = vst [vmem:[%s178 + $0x20] sm:$0xff] %v628
        %637 = vst [vmem:[%s178 + $0x28] sm:$0xff] %v629
        %638 = vst [vmem:[%s178 + $0x30] sm:$0xff] %v630
        %639 = vst [vmem:[%s178 + $0x38] sm:$0xff] %v631
        %s640 = sand.u32 %s98, 1
        %s641 = scalar_lea.sflag [#allocation3], %s640
        %s642 = sand.u32 %s98, 1
        %s643 = smul.addr %s642, 64
        %s644 = scalar_lea.vmem [#allocation2], %s643
        // Predicated region
        $region33: #{tpu_custom_call.1} parent=31 // pred_check
          %p645 = pneg %p108
        $region34: #{tpu_custom_call.1} parent=31 // pred_check_branch
          %647 = sbr.rel (%p645) target = $region36
        $region35: #{tpu_custom_call.1} parent=31 // pred_region
          %s649 = ssub.s32 1024, 1024
          %650 = vsyncadd %s641, %s649
          %s651 = smul.addr %s17, 8
          %s652 = smul.addr %s651, 128
          %s653 = scalar_lea.hbm %s3, %s652
          %s654 = sshll.u32 %s644, 4
          %s655 = int_to_ptr.vmem [resolvable:$true] %s654
          %660 = dma.vmem_to_hbm [thread:$0]  %s655, 1024, %s653, %s641, 128, 128, 8
        $region36: #{tpu_custom_call.1} parent=31 // pred_fallthru
          _
      $region32: #{tpu_custom_call.1} parent=5 // pred_fallthru
        _
      %p661 = scmp.le.s32.totalorder 2, %s12
      // Predicated region
      $region37: #{tpu_custom_call.1} parent=5 // pred_check
        %p662 = pneg %p661
      $region38: #{tpu_custom_call.1} parent=5 // pred_check_branch
        %664 = sbr.rel (%p662) target = $region40
      $region39: #{tpu_custom_call.1} parent=5 // pred_region
        %s665 = ssub.s32 %s12, 2
        // Predicated region
        $region41: #{tpu_custom_call.1} parent=39 // pred_check
          %p666 = pneg %p114
        $region42: #{tpu_custom_call.1} parent=39 // pred_check_branch
          %668 = sbr.rel (%p666) target = $region44
        $region43: #{tpu_custom_call.1} parent=39 // pred_region
          %s669 = sand.u32 %s99, 1
          %s670 = scalar_lea.sflag [#allocation3], %s669
          %s671 = sand.u32 %s99, 1
          %s672 = smul.addr %s671, 64
          %s673 = scalar_lea.vmem [#allocation2], %s672
          %674 = dma.done %s670, 1024
        $region44: #{tpu_custom_call.1} parent=39 // pred_fallthru
          _
      $region40: #{tpu_custom_call.1} parent=5 // pred_fallthru
        _
    $region6: #{tpu_custom_call.1} parent=1 // loop_footer
      %s16 = sadd.s32 1, %s12
    $region7: #{tpu_custom_call.1} parent=1 // loop_footer_branch
      %11 = sbr.rel target = $region3
    $region8: #{tpu_custom_call.1} parent=1 // loop_exit
      _
    %675 = vsyncpa [#allocation3], 1
    %s676 = scalar_lea.sflag [#allocation3], 1
    %677 = vsyncpa %s676, 1

</llo_original>
